<compile_context>
chip_gen: v7x
topology: tpu7x:2x2x1
jax: 0.10.0
libtpu: 0.0.40
codegen_flags: <defaults>
</compile_context>

<pallas_src>
import functools

import jax
import jax.numpy as jnp
from jax.experimental import pallas as pl
from jax.experimental.pallas import tpu as pltpu


# ---------------------------------------------------------------------------
# Fused kernel: one grid step == one batch element.
# ---------------------------------------------------------------------------
def _feature_cnn_kernel(x_ref, w1_ref, a1_ref, w2_ref, a2_ref, o_ref,
                        xp_ref, h1_ref, pp_ref, h2_ref, *, pad1, pad2):
    # ---- stage 1: Conv1d(C_in -> 64, k=5, pad=3) + BN + ReLU + MaxPool(2) ----
    L_in, C_in = x_ref.shape[1], x_ref.shape[2]
    K1 = w1_ref.shape[0]
    L1 = L_in + 2 * pad1 - K1 + 1
    P1 = L1 // 2

    xp_ref[...] = jnp.zeros_like(xp_ref)              # zero-padded input (L_in+2*pad1, C_in)
    xp_ref[pad1:pad1 + L_in, :] = x_ref[0]

    acc1 = jnp.dot(xp_ref[0:L1, :], w1_ref[0], preferred_element_type=jnp.float32)
    for k in range(1, K1):                            # static tap loop
        acc1 = acc1 + jnp.dot(xp_ref[k:k + L1, :], w1_ref[k],
                              preferred_element_type=jnp.float32)

    a1 = a1_ref[...]                                  # (2, 64): [scale; shift] (bias+BN folded)
    h1_ref[...] = jnp.maximum(acc1 * a1[0:1, :] + a1[1:2, :], 0.0)

    # MaxPool1d(2): pairwise max of even/odd rows via sublane-strided reads.
    p1 = jnp.maximum(h1_ref[pl.ds(0, P1, 2), :], h1_ref[pl.ds(1, P1, 2), :])

    # ---- stage 2: Conv1d(64 -> 128, k=3, pad=2) + BN + ReLU + MaxPool(2) ----
    K2 = w2_ref.shape[0]
    L2 = P1 + 2 * pad2 - K2 + 1
    P2 = L2 // 2

    pp_ref[...] = jnp.zeros_like(pp_ref)              # zero-padded pooled input
    pp_ref[pad2:pad2 + P1, :] = p1

    acc2 = jnp.dot(pp_ref[0:L2, :], w2_ref[0], preferred_element_type=jnp.float32)
    for k in range(1, K2):
        acc2 = acc2 + jnp.dot(pp_ref[k:k + L2, :], w2_ref[k],
                              preferred_element_type=jnp.float32)

    a2 = a2_ref[...]                                  # (2, 128)
    h2_ref[...] = jnp.maximum(acc2 * a2[0:1, :] + a2[1:2, :], 0.0)

    o_ref[0] = jnp.maximum(h2_ref[pl.ds(0, P2, 2), :], h2_ref[pl.ds(1, P2, 2), :])


# ---------------------------------------------------------------------------
# Wrapper: layout + parameter plumbing, single pallas_call.
# ---------------------------------------------------------------------------
def feature_cnn_forward(x_bcl, params, *, eps=1e-5):
    """x_bcl: (B, C_in, L) float32  ->  (B, 128, L_out), matching FeatureCNN.forward."""
    B, C_in, L = x_bcl.shape
    w1, b1, bn1 = params["w1"], params["b1"], params["bn1"]
    w2, b2, bn2 = params["w2"], params["b2"], params["bn2"]
    K1, pad1 = w1.shape[2], 3
    K2, pad2 = w2.shape[2], 2
    C1, C2 = w1.shape[0], w2.shape[0]

    L1 = L + 2 * pad1 - K1 + 1
    P1 = L1 // 2
    L2 = P1 + 2 * pad2 - K2 + 1
    P2 = L2 // 2

    # Per-tap weights with channels-last: tap k is a (C_in, C_out) MXU operand.
    w1_taps = jnp.transpose(w1, (2, 1, 0))            # (K1, C_in, 64)
    w2_taps = jnp.transpose(w2, (2, 1, 0))            # (K2, 64, 128)

    # Fold conv bias + eval-mode BatchNorm into one per-channel affine: y = conv*scale + shift.
    def fold(b, bn):
        scale = bn["gamma"] * jax.lax.rsqrt(bn["var"] + eps)
        shift = (b - bn["mean"]) * scale + bn["beta"]
        return jnp.stack([scale, shift], axis=0)      # (2, C_out)

    affine1 = fold(b1, bn1)
    affine2 = fold(b2, bn2)

    x_blc = jnp.transpose(x_bcl, (0, 2, 1))           # (B, L, C_in): channels on lanes

    kernel = functools.partial(_feature_cnn_kernel, pad1=pad1, pad2=pad2)
    full3 = lambda b: (0, 0, 0)
    full2 = lambda b: (0, 0)

    out_blc = pl.pallas_call(
        kernel,
        out_shape=jax.ShapeDtypeStruct((B, P2, C2), jnp.float32),
        grid_spec=pltpu.PrefetchScalarGridSpec(
            num_scalar_prefetch=0,
            grid=(B,),
            in_specs=[
                pl.BlockSpec((1, L, C_in), lambda b: (b, 0, 0)),   # x (one batch / step)
                pl.BlockSpec((K1, C_in, C1), full3),               # conv1 taps
                pl.BlockSpec((2, C1), full2),                      # conv1 bias+BN affine
                pl.BlockSpec((K2, C1, C2), full3),                 # conv2 taps
                pl.BlockSpec((2, C2), full2),                      # conv2 bias+BN affine
            ],
            out_specs=pl.BlockSpec((1, P2, C2), lambda b: (b, 0, 0)),
            scratch_shapes=[
                pltpu.VMEM((L + 2 * pad1, C_in), jnp.float32),     # padded input
                pltpu.VMEM((L1, C1), jnp.float32),                 # conv1+BN+ReLU
                pltpu.VMEM((P1 + 2 * pad2, C1), jnp.float32),      # padded pooled input
                pltpu.VMEM((L2, C2), jnp.float32),                 # conv2+BN+ReLU
            ],
        ),
        compiler_params=pltpu.CompilerParams(dimension_semantics=("parallel",)),
    )(x_blc, w1_taps, affine1, w2_taps, affine2)

    return jnp.transpose(out_blc, (0, 2, 1))          # back to (B, C_out, L_out)


# ---------------------------------------------------------------------------
# Pure-JAX reference (same math) for correctness checking.
# ---------------------------------------------------------------------------
def _ref_forward(x, params, eps=1e-5):
    def conv1d(h, w, b, pad):
        y = jax.lax.conv_general_dilated(
            h, w, window_strides=(1,), padding=[(pad, pad)],
            dimension_numbers=("NCH", "OIH", "NCH"))
        return y + b[None, :, None]

    def bn(h, p):
        s = p["gamma"] / jnp.sqrt(p["var"] + eps)
        return (h - p["mean"][None, :, None]) * s[None, :, None] + p["beta"][None, :, None]

    def maxpool2(h):
        B, C, L = h.shape
        P = L // 2
        return jnp.max(h[:, :, :2 * P].reshape(B, C, P, 2), axis=-1)

    h = maxpool2(jax.nn.relu(bn(conv1d(x, params["w1"], params["b1"], 3), params["bn1"])))
    h = maxpool2(jax.nn.relu(bn(conv1d(h, params["w2"], params["b2"], 2), params["bn2"])))
    return h


# ---------------------------------------------------------------------------
# Deterministic parameter init.
# ---------------------------------------------------------------------------
def init_params(key, in_channels):
    ks = jax.random.split(key, 12)

    def bn_params(kg, kb, km, kv, c):
        return {
            "gamma": 1.0 + 0.1 * jax.random.normal(kg, (c,), jnp.float32),
            "beta": 0.05 * jax.random.normal(kb, (c,), jnp.float32),
            "mean": 0.1 * jax.random.normal(km, (c,), jnp.float32),
            "var": 0.5 + jax.random.uniform(kv, (c,), dtype=jnp.float32),
        }

    return {
        "w1": 0.1 * jax.random.normal(ks[0], (64, in_channels, 5), jnp.float32),
        "b1": 0.05 * jax.random.normal(ks[1], (64,), jnp.float32),
        "bn1": bn_params(ks[2], ks[3], ks[4], ks[5], 64),
        "w2": 0.05 * jax.random.normal(ks[6], (128, 64, 3), jnp.float32),
        "b2": 0.05 * jax.random.normal(ks[7], (128,), jnp.float32),
        "bn2": bn_params(ks[8], ks[9], ks[10], ks[11], 128),
    }


if __name__ == "__main__":
    B, C_in, L = 2, 4, 16
    key = jax.random.PRNGKey(0)
    kx, kp = jax.random.split(key)
    x = jax.random.normal(kx, (B, C_in, L), jnp.float32)       # (B, in_channels, seq)
    params = init_params(kp, C_in)

    out = jax.block_until_ready(jax.jit(feature_cnn_forward)(x, params))
    ref = jax.block_until_ready(_ref_forward(x, params))

    assert out.shape == (B, 128, 5), out.shape
    max_err = float(jnp.max(jnp.abs(out - ref)))
    assert jnp.allclose(out, ref, atol=1e-4, rtol=1e-4), max_err
    print("KERNEL_OK")
</pallas_src>

<mosaic_0001>
module attributes {stable_mosaic.version = 11 : i64} {
  func.func @_feature_cnn_kernel(%arg0: i32, %arg1: memref<1x16x4xf32, #tpu.memory_space<vmem>>, %arg2: memref<5x4x64xf32, #tpu.memory_space<vmem>>, %arg3: memref<2x64xf32, #tpu.memory_space<vmem>>, %arg4: memref<3x64x128xf32, #tpu.memory_space<vmem>>, %arg5: memref<2x128xf32, #tpu.memory_space<vmem>>, %arg6: memref<1x5x128xf32, #tpu.memory_space<vmem>>, %arg7: memref<22x4xf32, #tpu.memory_space<vmem>>, %arg8: memref<18x64xf32, #tpu.memory_space<vmem>>, %arg9: memref<13x64xf32, #tpu.memory_space<vmem>>, %arg10: memref<11x128xf32, #tpu.memory_space<vmem>>) attributes {dimension_semantics = [#tpu.dimension_semantics<parallel>], iteration_bounds = array<i64: 2>, scalar_prefetch = 0 : i64, scratch_operands = 4 : i64, tpu.core_type = #tpu.core_type<tc>, window_params = [{transform_indices = @transform_0, window_bounds = array<i64: 1, 16, 4>}, {pipeline_mode = #tpu.pipeline_mode<synchronous>, transform_indices = @transform_1, window_bounds = array<i64: 5, 4, 64>}, {pipeline_mode = #tpu.pipeline_mode<synchronous>, transform_indices = @transform_2, window_bounds = array<i64: 2, 64>}, {pipeline_mode = #tpu.pipeline_mode<synchronous>, transform_indices = @transform_3, window_bounds = array<i64: 3, 64, 128>}, {pipeline_mode = #tpu.pipeline_mode<synchronous>, transform_indices = @transform_4, window_bounds = array<i64: 2, 128>}, {transform_indices = @transform_5, window_bounds = array<i64: 1, 5, 128>}]} {
    %cst = arith.constant 0.000000e+00 : f32
    %0 = vector.broadcast %cst : f32 to vector<22x4xf32>
    %c0 = arith.constant 0 : index
    %c0_0 = arith.constant 0 : index
    %1 = vector.load %arg7[%c0, %c0_0] : memref<22x4xf32, #tpu.memory_space<vmem>>, vector<22x4xf32>
    tpu.vector_store %arg7[%c0, %c0_0], %0 {strides = array<i32>} : memref<22x4xf32, #tpu.memory_space<vmem>>, vector<22x4xf32>,
    %c0_1 = arith.constant 0 : index
    %c0_2 = arith.constant 0 : index
    %c0_3 = arith.constant 0 : index
    %2 = vector.load %arg1[%c0_1, %c0_2, %c0_3] : memref<1x16x4xf32, #tpu.memory_space<vmem>>, vector<1x16x4xf32>
    %3 = vector.shape_cast %2 : vector<1x16x4xf32> to vector<16x4xf32>
    %c3 = arith.constant 3 : index
    %c0_4 = arith.constant 0 : index
    %4 = vector.load %arg7[%c3, %c0_4] : memref<22x4xf32, #tpu.memory_space<vmem>>, vector<16x4xf32>
    tpu.vector_store %arg7[%c3, %c0_4], %3 {strides = array<i32>} : memref<22x4xf32, #tpu.memory_space<vmem>>, vector<16x4xf32>,
    %c0_5 = arith.constant 0 : index
    %c0_6 = arith.constant 0 : index
    %5 = vector.load %arg7[%c0_5, %c0_6] : memref<22x4xf32, #tpu.memory_space<vmem>>, vector<18x4xf32>
    %c0_7 = arith.constant 0 : index
    %c0_8 = arith.constant 0 : index
    %c0_9 = arith.constant 0 : index
    %6 = vector.load %arg2[%c0_7, %c0_8, %c0_9] : memref<5x4x64xf32, #tpu.memory_space<vmem>>, vector<1x4x64xf32>
    %7 = vector.shape_cast %6 : vector<1x4x64xf32> to vector<4x64xf32>
    %cst_10 = arith.constant dense<0.000000e+00> : vector<18x64xf32>
    %8 = tpu.matmul %5, %7, %cst_10 {dimension_numbers = #tpu.dot_dimension_numbers<[1], [0], [0], [1], [0, 0, 1, 1], [], []>} : vector<18x4xf32>, vector<4x64xf32>, vector<18x64xf32> -> vector<18x64xf32>
    %c1 = arith.constant 1 : index
    %c0_11 = arith.constant 0 : index
    %9 = vector.load %arg7[%c1, %c0_11] : memref<22x4xf32, #tpu.memory_space<vmem>>, vector<18x4xf32>
    %c1_12 = arith.constant 1 : index
    %c0_13 = arith.constant 0 : index
    %c0_14 = arith.constant 0 : index
    %10 = vector.load %arg2[%c1_12, %c0_13, %c0_14] : memref<5x4x64xf32, #tpu.memory_space<vmem>>, vector<1x4x64xf32>
    %11 = vector.shape_cast %10 : vector<1x4x64xf32> to vector<4x64xf32>
    %cst_15 = arith.constant dense<0.000000e+00> : vector<18x64xf32>
    %12 = tpu.matmul %9, %11, %cst_15 {dimension_numbers = #tpu.dot_dimension_numbers<[1], [0], [0], [1], [0, 0, 1, 1], [], []>} : vector<18x4xf32>, vector<4x64xf32>, vector<18x64xf32> -> vector<18x64xf32>
    %13 = arith.addf %8, %12 : vector<18x64xf32>
    %c2 = arith.constant 2 : index
    %c0_16 = arith.constant 0 : index
    %14 = vector.load %arg7[%c2, %c0_16] : memref<22x4xf32, #tpu.memory_space<vmem>>, vector<18x4xf32>
    %c2_17 = arith.constant 2 : index
    %c0_18 = arith.constant 0 : index
    %c0_19 = arith.constant 0 : index
    %15 = vector.load %arg2[%c2_17, %c0_18, %c0_19] : memref<5x4x64xf32, #tpu.memory_space<vmem>>, vector<1x4x64xf32>
    %16 = vector.shape_cast %15 : vector<1x4x64xf32> to vector<4x64xf32>
    %cst_20 = arith.constant dense<0.000000e+00> : vector<18x64xf32>
    %17 = tpu.matmul %14, %16, %cst_20 {dimension_numbers = #tpu.dot_dimension_numbers<[1], [0], [0], [1], [0, 0, 1, 1], [], []>} : vector<18x4xf32>, vector<4x64xf32>, vector<18x64xf32> -> vector<18x64xf32>
    %18 = arith.addf %13, %17 : vector<18x64xf32>
    %c3_21 = arith.constant 3 : index
    %c0_22 = arith.constant 0 : index
    %19 = vector.load %arg7[%c3_21, %c0_22] : memref<22x4xf32, #tpu.memory_space<vmem>>, vector<18x4xf32>
    %c3_23 = arith.constant 3 : index
    %c0_24 = arith.constant 0 : index
    %c0_25 = arith.constant 0 : index
    %20 = vector.load %arg2[%c3_23, %c0_24, %c0_25] : memref<5x4x64xf32, #tpu.memory_space<vmem>>, vector<1x4x64xf32>
    %21 = vector.shape_cast %20 : vector<1x4x64xf32> to vector<4x64xf32>
    %cst_26 = arith.constant dense<0.000000e+00> : vector<18x64xf32>
    %22 = tpu.matmul %19, %21, %cst_26 {dimension_numbers = #tpu.dot_dimension_numbers<[1], [0], [0], [1], [0, 0, 1, 1], [], []>} : vector<18x4xf32>, vector<4x64xf32>, vector<18x64xf32> -> vector<18x64xf32>
    %23 = arith.addf %18, %22 : vector<18x64xf32>
    %c4 = arith.constant 4 : index
    %c0_27 = arith.constant 0 : index
    %24 = vector.load %arg7[%c4, %c0_27] : memref<22x4xf32, #tpu.memory_space<vmem>>, vector<18x4xf32>
    %c4_28 = arith.constant 4 : index
    %c0_29 = arith.constant 0 : index
    %c0_30 = arith.constant 0 : index
    %25 = vector.load %arg2[%c4_28, %c0_29, %c0_30] : memref<5x4x64xf32, #tpu.memory_space<vmem>>, vector<1x4x64xf32>
    %26 = vector.shape_cast %25 : vector<1x4x64xf32> to vector<4x64xf32>
    %cst_31 = arith.constant dense<0.000000e+00> : vector<18x64xf32>
    %27 = tpu.matmul %24, %26, %cst_31 {dimension_numbers = #tpu.dot_dimension_numbers<[1], [0], [0], [1], [0, 0, 1, 1], [], []>} : vector<18x4xf32>, vector<4x64xf32>, vector<18x64xf32> -> vector<18x64xf32>
    %28 = arith.addf %23, %27 : vector<18x64xf32>
    %c0_32 = arith.constant 0 : index
    %c0_33 = arith.constant 0 : index
    %29 = vector.load %arg3[%c0_32, %c0_33] : memref<2x64xf32, #tpu.memory_space<vmem>>, vector<2x64xf32>
    %30 = vector.extract_strided_slice %29 {offsets = [0, 0], sizes = [1, 64], strides = [1, 1]} : vector<2x64xf32> to vector<1x64xf32>
    %31 = vector.broadcast %30 : vector<1x64xf32> to vector<18x64xf32>
    %32 = arith.mulf %28, %31 : vector<18x64xf32>
    %33 = vector.extract_strided_slice %29 {offsets = [1, 0], sizes = [1, 64], strides = [1, 1]} : vector<2x64xf32> to vector<1x64xf32>
    %34 = vector.broadcast %33 : vector<1x64xf32> to vector<18x64xf32>
    %35 = arith.addf %32, %34 : vector<18x64xf32>
    %cst_34 = arith.constant 0.000000e+00 : f32
    %36 = vector.broadcast %cst_34 : f32 to vector<18x64xf32>
    %37 = arith.maximumf %35, %36 : vector<18x64xf32>
    %c0_35 = arith.constant 0 : index
    %c0_36 = arith.constant 0 : index
    %38 = vector.load %arg8[%c0_35, %c0_36] : memref<18x64xf32, #tpu.memory_space<vmem>>, vector<18x64xf32>
    tpu.vector_store %arg8[%c0_35, %c0_36], %37 {strides = array<i32>} : memref<18x64xf32, #tpu.memory_space<vmem>>, vector<18x64xf32>,
    %c0_37 = arith.constant 0 : index
    %c0_38 = arith.constant 0 : index
    %39 = tpu.strided_load %arg8[%c0_37, %c0_38] {strides = array<i32: 2, 1>} : memref<18x64xf32, #tpu.memory_space<vmem>>, vector<9x64xf32>
    %c1_39 = arith.constant 1 : index
    %c0_40 = arith.constant 0 : index
    %40 = tpu.strided_load %arg8[%c1_39, %c0_40] {strides = array<i32: 2, 1>} : memref<18x64xf32, #tpu.memory_space<vmem>>, vector<9x64xf32>
    %41 = arith.maximumf %39, %40 : vector<9x64xf32>
    %cst_41 = arith.constant 0.000000e+00 : f32
    %42 = vector.broadcast %cst_41 : f32 to vector<13x64xf32>
    %c0_42 = arith.constant 0 : index
    %c0_43 = arith.constant 0 : index
    %43 = vector.load %arg9[%c0_42, %c0_43] : memref<13x64xf32, #tpu.memory_space<vmem>>, vector<13x64xf32>
    tpu.vector_store %arg9[%c0_42, %c0_43], %42 {strides = array<i32>} : memref<13x64xf32, #tpu.memory_space<vmem>>, vector<13x64xf32>,
    %c2_44 = arith.constant 2 : index
    %c0_45 = arith.constant 0 : index
    %44 = vector.load %arg9[%c2_44, %c0_45] : memref<13x64xf32, #tpu.memory_space<vmem>>, vector<9x64xf32>
    tpu.vector_store %arg9[%c2_44, %c0_45], %41 {strides = array<i32>} : memref<13x64xf32, #tpu.memory_space<vmem>>, vector<9x64xf32>,
    %c0_46 = arith.constant 0 : index
    %c0_47 = arith.constant 0 : index
    %45 = vector.load %arg9[%c0_46, %c0_47] : memref<13x64xf32, #tpu.memory_space<vmem>>, vector<11x64xf32>
    %c0_48 = arith.constant 0 : index
    %c0_49 = arith.constant 0 : index
    %c0_50 = arith.constant 0 : index
    %46 = vector.load %arg4[%c0_48, %c0_49, %c0_50] : memref<3x64x128xf32, #tpu.memory_space<vmem>>, vector<1x64x128xf32>
    %47 = vector.shape_cast %46 : vector<1x64x128xf32> to vector<64x128xf32>
    %cst_51 = arith.constant dense<0.000000e+00> : vector<11x128xf32>
    %48 = tpu.matmul %45, %47, %cst_51 {dimension_numbers = #tpu.dot_dimension_numbers<[1], [0], [0], [1], [0, 0, 1, 1], [], []>} : vector<11x64xf32>, vector<64x128xf32>, vector<11x128xf32> -> vector<11x128xf32>
    %c1_52 = arith.constant 1 : index
    %c0_53 = arith.constant 0 : index
    %49 = vector.load %arg9[%c1_52, %c0_53] : memref<13x64xf32, #tpu.memory_space<vmem>>, vector<11x64xf32>
    %c1_54 = arith.constant 1 : index
    %c0_55 = arith.constant 0 : index
    %c0_56 = arith.constant 0 : index
    %50 = vector.load %arg4[%c1_54, %c0_55, %c0_56] : memref<3x64x128xf32, #tpu.memory_space<vmem>>, vector<1x64x128xf32>
    %51 = vector.shape_cast %50 : vector<1x64x128xf32> to vector<64x128xf32>
    %cst_57 = arith.constant dense<0.000000e+00> : vector<11x128xf32>
    %52 = tpu.matmul %49, %51, %cst_57 {dimension_numbers = #tpu.dot_dimension_numbers<[1], [0], [0], [1], [0, 0, 1, 1], [], []>} : vector<11x64xf32>, vector<64x128xf32>, vector<11x128xf32> -> vector<11x128xf32>
    %53 = arith.addf %48, %52 : vector<11x128xf32>
    %c2_58 = arith.constant 2 : index
    %c0_59 = arith.constant 0 : index
    %54 = vector.load %arg9[%c2_58, %c0_59] : memref<13x64xf32, #tpu.memory_space<vmem>>, vector<11x64xf32>
    %c2_60 = arith.constant 2 : index
    %c0_61 = arith.constant 0 : index
    %c0_62 = arith.constant 0 : index
    %55 = vector.load %arg4[%c2_60, %c0_61, %c0_62] : memref<3x64x128xf32, #tpu.memory_space<vmem>>, vector<1x64x128xf32>
    %56 = vector.shape_cast %55 : vector<1x64x128xf32> to vector<64x128xf32>
    %cst_63 = arith.constant dense<0.000000e+00> : vector<11x128xf32>
    %57 = tpu.matmul %54, %56, %cst_63 {dimension_numbers = #tpu.dot_dimension_numbers<[1], [0], [0], [1], [0, 0, 1, 1], [], []>} : vector<11x64xf32>, vector<64x128xf32>, vector<11x128xf32> -> vector<11x128xf32>
    %58 = arith.addf %53, %57 : vector<11x128xf32>
    %c0_64 = arith.constant 0 : index
    %c0_65 = arith.constant 0 : index
    %59 = vector.load %arg5[%c0_64, %c0_65] : memref<2x128xf32, #tpu.memory_space<vmem>>, vector<2x128xf32>
    %60 = vector.extract_strided_slice %59 {offsets = [0, 0], sizes = [1, 128], strides = [1, 1]} : vector<2x128xf32> to vector<1x128xf32>
    %61 = vector.broadcast %60 : vector<1x128xf32> to vector<11x128xf32>
    %62 = arith.mulf %58, %61 : vector<11x128xf32>
    %63 = vector.extract_strided_slice %59 {offsets = [1, 0], sizes = [1, 128], strides = [1, 1]} : vector<2x128xf32> to vector<1x128xf32>
    %64 = vector.broadcast %63 : vector<1x128xf32> to vector<11x128xf32>
    %65 = arith.addf %62, %64 : vector<11x128xf32>
    %cst_66 = arith.constant 0.000000e+00 : f32
    %66 = vector.broadcast %cst_66 : f32 to vector<11x128xf32>
    %67 = arith.maximumf %65, %66 : vector<11x128xf32>
    %c0_67 = arith.constant 0 : index
    %c0_68 = arith.constant 0 : index
    %68 = vector.load %arg10[%c0_67, %c0_68] : memref<11x128xf32, #tpu.memory_space<vmem>>, vector<11x128xf32>
    tpu.vector_store %arg10[%c0_67, %c0_68], %67 {strides = array<i32>} : memref<11x128xf32, #tpu.memory_space<vmem>>, vector<11x128xf32>,
    %c0_69 = arith.constant 0 : index
    %c0_70 = arith.constant 0 : index
    %69 = tpu.strided_load %arg10[%c0_69, %c0_70] {strides = array<i32: 2, 1>} : memref<11x128xf32, #tpu.memory_space<vmem>>, vector<5x128xf32>
    %c1_71 = arith.constant 1 : index
    %c0_72 = arith.constant 0 : index
    %70 = tpu.strided_load %arg10[%c1_71, %c0_72] {strides = array<i32: 2, 1>} : memref<11x128xf32, #tpu.memory_space<vmem>>, vector<5x128xf32>
    %71 = arith.maximumf %69, %70 : vector<5x128xf32>
    %c0_73 = arith.constant 0 : index
    %c0_74 = arith.constant 0 : index
    %c0_75 = arith.constant 0 : index
    %72 = vector.load %arg6[%c0_73, %c0_74, %c0_75] : memref<1x5x128xf32, #tpu.memory_space<vmem>>, vector<1x5x128xf32>
    %73 = vector.shape_cast %72 : vector<1x5x128xf32> to vector<5x128xf32>
    %74 = vector.shape_cast %71 : vector<5x128xf32> to vector<1x5x128xf32>
    tpu.vector_store %arg6[%c0_73, %c0_74, %c0_75], %74 {strides = array<i32>} : memref<1x5x128xf32, #tpu.memory_space<vmem>>, vector<1x5x128xf32>,
    return
  }
  func.func @transform_0(%arg0: i32) -> (i32, i32, i32) {
    %c0_i32 = arith.constant 0 : i32
    %c0_i32_0 = arith.constant 0 : i32
    %c0_i32_1 = arith.constant 0 : i32
    return %arg0, %c0_i32, %c0_i32_0 : i32, i32, i32
  }
  func.func @transform_1(%arg0: i32) -> (i32, i32, i32) {
    %c0_i32 = arith.constant 0 : i32
    %c0_i32_0 = arith.constant 0 : i32
    %c0_i32_1 = arith.constant 0 : i32
    %c0_i32_2 = arith.constant 0 : i32
    return %c0_i32, %c0_i32_0, %c0_i32_1 : i32, i32, i32
  }
  func.func @transform_2(%arg0: i32) -> (i32, i32) {
    %c0_i32 = arith.constant 0 : i32
    %c0_i32_0 = arith.constant 0 : i32
    %c0_i32_1 = arith.constant 0 : i32
    return %c0_i32, %c0_i32_0 : i32, i32
  }
  func.func @transform_3(%arg0: i32) -> (i32, i32, i32) {
    %c0_i32 = arith.constant 0 : i32
    %c0_i32_0 = arith.constant 0 : i32
    %c0_i32_1 = arith.constant 0 : i32
    %c0_i32_2 = arith.constant 0 : i32
    return %c0_i32, %c0_i32_0, %c0_i32_1 : i32, i32, i32
  }
  func.func @transform_4(%arg0: i32) -> (i32, i32) {
    %c0_i32 = arith.constant 0 : i32
    %c0_i32_0 = arith.constant 0 : i32
    %c0_i32_1 = arith.constant 0 : i32
    return %c0_i32, %c0_i32_0 : i32, i32
  }
  func.func @transform_5(%arg0: i32) -> (i32, i32, i32) {
    %c0_i32 = arith.constant 0 : i32
    %c0_i32_0 = arith.constant 0 : i32
    %c0_i32_1 = arith.constant 0 : i32
    return %arg0, %c0_i32, %c0_i32_0 : i32, i32, i32
  }
}

</mosaic_0001>

<llo_original>
// kernel: feature_cnn_forward.1
$region0: #{feature_cnn_forward.1}
  #allocation0 [shape = 'u32[]', space=smem, size = 0x4, offset = 0x4, fixed_abs, tag = 'smem constant byte address 0x4 - core index']
  #allocation1 [shape = 'u32[144,128]{1,0:T(1,128)}', space=vmem, size = 0x12000, scoped, tag = 'internal scratch']
  #allocation2 [shape = 'f32[22,4]{1,0:T(8,128)}', space=vmem, size = 0x3000, scoped, tag = 'scratch operand']
  #allocation3 [shape = 'f32[18,64]{1,0:T(8,128)}', space=vmem, size = 0x3000, scoped, tag = 'scratch operand']
  #allocation4 [shape = 'f32[13,64]{1,0:T(8,128)}', space=vmem, size = 0x2000, scoped, tag = 'scratch operand']
  #allocation5 [shape = 'f32[11,128]{1,0:T(8,128)}', space=vmem, size = 0x2000, scoped, tag = 'scratch operand']
  %s0 = inlined_call_operand.vmem [shape: f32[2,16,4], index: 0, kind: input, shape index: {}]
  %s1 = inlined_call_operand.vmem [shape: f32[5,4,64], index: 1, kind: input, shape index: {}]
  %s2 = inlined_call_operand.vmem [shape: f32[2,64], index: 2, kind: input, shape index: {}]
  %s3 = inlined_call_operand.hbm [shape: f32[3,64,128], index: 3, kind: input, shape index: {}]
  %s4 = inlined_call_operand.vmem [shape: f32[2,128], index: 4, kind: input, shape index: {}]
  %s5 = inlined_call_operand.vmem [shape: f32[2,5,128], index: 5, kind: output, shape index: {}]
  %s6 = sld [smem:[#allocation0]]
  $region57: #{feature_cnn_forward.1} parent=0
    _
  %s8 = ssub.s32 1, %s6
  %s9 = scalar_select 0, %s8, %s6
  $region1: #{feature_cnn_forward.1} parent=0
    #allocation6 [shape = 'u8[98304]{0}', space=vmem, size = 0x18000, scoped, tag = 'input window, operand 3, single buffered']
    #allocation7 [shape = 's32[2]{0}', space=sflag, size = 0x8, scoped, tag = 'scoped memory for feature_cnn_forward.1']
    %10 = vsyncpa [#allocation7], 0
    loop: start=0, step=1, limit=4
    $region2: #{feature_cnn_forward.1} parent=1 // loop_pre_header
      _
    $region3: #{feature_cnn_forward.1} parent=1 // loop_header
      %s12 = sphi 0, %s16
      %p13 = scmp.ge.s32.totalorder %s12, 4
      %s22 = sphi 0, %s24
      %s25 = sphi 0, %s22
      %s26 = sphi 0, %s25
      %s42 = sphi 0, %s26
      %s46 = sphi 0, %s46
      %s48 = sphi 0, %s46
      %s49 = sphi 0, %s48
      %s63 = sphi 0, %s49
      %s67 = sphi 0, %s67
      %s69 = sphi 0, %s67
      %s70 = sphi 0, %s69
      %s84 = sphi 0, %s70
      %s88 = sphi 0, %s88
      %s90 = sphi 0, %s88
      %s91 = sphi 0, %s90
      %s105 = sphi 0, %s91
      %s109 = sphi 0, %s109
      %s111 = sphi 0, %s109
      %s112 = sphi 0, %s111
      %s126 = sphi 0, %s112
      %s132 = sphi 0, %s134
      %s135 = sphi 0, %s132
      %s136 = sphi 0, %s135
      %s152 = sphi 0, %s136
    $region4: #{feature_cnn_forward.1} parent=1 // loop_header_branch
      %15 = sbr.rel (%p13) target = $region8
    $region5: #{feature_cnn_forward.1} parent=1 // loop_body
      %s17 = ssub.s32 %s12, 1
      %s18 = ssub.s32 %s12, 2
      %s19 = sadd.s32 %s12, 1
      %s20 = ssub.s32 %s12, %s19
      %p21 = scmp.eq.s32.totalorder %s20, 0
      %s23 = sadd.s32 %s22, 1
      %s24 = scalar_select %p21, %s22, %s23
      %p27 = pneg %p21
      %p28 = scmp.eq.s32.totalorder %s12, 1
      %p29 = por %p27, %p28
      %p30 = scmp.ne.s32.totalorder %s22, %s25
      %p31 = scmp.eq.s32.totalorder %s12, 0
      %p32 = por %p30, %p31
      %p33 = scmp.ne.s32.totalorder %s22, %s25
      %p34 = scmp.eq.s32.totalorder %s17, 1
      %p35 = por %p33, %p34
      %p36 = scmp.ne.s32.totalorder %s25, %s26
      %p37 = scmp.eq.s32.totalorder %s17, 0
      %p38 = por %p36, %p37
      %p39 = scmp.ne.s32.totalorder %s25, %s26
      %p40 = scmp.eq.s32.totalorder %s18, 1
      %p41 = por %p39, %p40
      %p43 = scmp.ne.s32.totalorder %s26, %s42
      %p44 = scmp.eq.s32.totalorder %s18, 0
      %p45 = por %p43, %p44
      %s47 = sadd.s32 %s46, 1
      %p50 = scmp.eq.s32.totalorder %s12, 1
      %p51 = scmp.ne.s32.totalorder %s46, %s48
      %p52 = scmp.eq.s32.totalorder %s12, 0
      %p53 = por %p51, %p52
      %p54 = scmp.ne.s32.totalorder %s46, %s48
      %p55 = scmp.eq.s32.totalorder %s17, 1
      %p56 = por %p54, %p55
      %p57 = scmp.ne.s32.totalorder %s48, %s49
      %p58 = scmp.eq.s32.totalorder %s17, 0
      %p59 = por %p57, %p58
      %p60 = scmp.ne.s32.totalorder %s48, %s49
      %p61 = scmp.eq.s32.totalorder %s18, 1
      %p62 = por %p60, %p61
      %p64 = scmp.ne.s32.totalorder %s49, %s63
      %p65 = scmp.eq.s32.totalorder %s18, 0
      %p66 = por %p64, %p65
      %s68 = sadd.s32 %s67, 1
      %p71 = scmp.eq.s32.totalorder %s12, 1
      %p72 = scmp.ne.s32.totalorder %s67, %s69
      %p73 = scmp.eq.s32.totalorder %s12, 0
      %p74 = por %p72, %p73
      %p75 = scmp.ne.s32.totalorder %s67, %s69
      %p76 = scmp.eq.s32.totalorder %s17, 1
      %p77 = por %p75, %p76
      %p78 = scmp.ne.s32.totalorder %s69, %s70
      %p79 = scmp.eq.s32.totalorder %s17, 0
      %p80 = por %p78, %p79
      %p81 = scmp.ne.s32.totalorder %s69, %s70
      %p82 = scmp.eq.s32.totalorder %s18, 1
      %p83 = por %p81, %p82
      %p85 = scmp.ne.s32.totalorder %s70, %s84
      %p86 = scmp.eq.s32.totalorder %s18, 0
      %p87 = por %p85, %p86
      %s89 = sadd.s32 %s88, 1
      %p92 = scmp.eq.s32.totalorder %s12, 1
      %p93 = scmp.ne.s32.totalorder %s88, %s90
      %p94 = scmp.eq.s32.totalorder %s12, 0
      %p95 = por %p93, %p94
      %p96 = scmp.ne.s32.totalorder %s88, %s90
      %p97 = scmp.eq.s32.totalorder %s17, 1
      %p98 = por %p96, %p97
      %p99 = scmp.ne.s32.totalorder %s90, %s91
      %p100 = scmp.eq.s32.totalorder %s17, 0
      %p101 = por %p99, %p100
      %p102 = scmp.ne.s32.totalorder %s90, %s91
      %p103 = scmp.eq.s32.totalorder %s18, 1
      %p104 = por %p102, %p103
      %p106 = scmp.ne.s32.totalorder %s91, %s105
      %p107 = scmp.eq.s32.totalorder %s18, 0
      %p108 = por %p106, %p107
      %s110 = sadd.s32 %s109, 1
      %p113 = scmp.eq.s32.totalorder %s12, 1
      %p114 = scmp.ne.s32.totalorder %s109, %s111
      %p115 = scmp.eq.s32.totalorder %s12, 0
      %p116 = por %p114, %p115
      %p117 = scmp.ne.s32.totalorder %s109, %s111
      %p118 = scmp.eq.s32.totalorder %s17, 1
      %p119 = por %p117, %p118
      %p120 = scmp.ne.s32.totalorder %s111, %s112
      %p121 = scmp.eq.s32.totalorder %s17, 0
      %p122 = por %p120, %p121
      %p123 = scmp.ne.s32.totalorder %s111, %s112
      %p124 = scmp.eq.s32.totalorder %s18, 1
      %p125 = por %p123, %p124
      %p127 = scmp.ne.s32.totalorder %s112, %s126
      %p128 = scmp.eq.s32.totalorder %s18, 0
      %p129 = por %p127, %p128
      %s130 = ssub.s32 %s12, %s19
      %p131 = scmp.eq.s32.totalorder %s130, 0
      %s133 = sadd.s32 %s132, 1
      %s134 = scalar_select %p131, %s132, %s133
      %p137 = pneg %p131
      %p138 = scmp.eq.s32.totalorder %s12, 1
      %p139 = por %p137, %p138
      %p140 = scmp.ne.s32.totalorder %s132, %s135
      %p141 = scmp.eq.s32.totalorder %s12, 0
      %p142 = por %p140, %p141
      %p143 = scmp.ne.s32.totalorder %s132, %s135
      %p144 = scmp.eq.s32.totalorder %s17, 1
      %p145 = por %p143, %p144
      %p146 = scmp.ne.s32.totalorder %s135, %s136
      %p147 = scmp.eq.s32.totalorder %s17, 0
      %p148 = por %p146, %p147
      %p149 = scmp.ne.s32.totalorder %s135, %s136
      %p150 = scmp.eq.s32.totalorder %s18, 1
      %p151 = por %p149, %p150
      %p153 = scmp.ne.s32.totalorder %s136, %s152
      %p154 = scmp.eq.s32.totalorder %s18, 0
      %p155 = por %p153, %p154
      %p156 = scmp.le.s32.totalorder 1, %s12
      %p157 = scmp.lt.s32.totalorder %s12, 3
      %p158 = pnand %p156, %p157
      %p159 = pneg %p158
      // Predicated region
      $region9: #{feature_cnn_forward.1} parent=5 // pred_check
        _
      $region10: #{feature_cnn_forward.1} parent=5 // pred_check_branch
        %161 = sbr.rel (%p158) target = $region12
      $region11: #{feature_cnn_forward.1} parent=5 // pred_region
        %s162 = ssub.s32 %s12, 1
        // Predicated region
        $region13: #{feature_cnn_forward.1} parent=11 // pred_check
          %p163 = pneg %p59
        $region14: #{feature_cnn_forward.1} parent=11 // pred_check_branch
          %165 = sbr.rel (%p163) target = $region16
        $region15: #{feature_cnn_forward.1} parent=11 // pred_region
          _
        $region16: #{feature_cnn_forward.1} parent=11 // pred_fallthru
          _
        // Predicated region
        $region17: #{feature_cnn_forward.1} parent=11 // pred_check
          %p166 = pneg %p80
        $region18: #{feature_cnn_forward.1} parent=11 // pred_check_branch
          %168 = sbr.rel (%p166) target = $region20
        $region19: #{feature_cnn_forward.1} parent=11 // pred_region
          _
        $region20: #{feature_cnn_forward.1} parent=11 // pred_fallthru
          _
        // Predicated region
        $region21: #{feature_cnn_forward.1} parent=11 // pred_check
          %p169 = pneg %p101
        $region22: #{feature_cnn_forward.1} parent=11 // pred_check_branch
          %171 = sbr.rel (%p169) target = $region24
        $region23: #{feature_cnn_forward.1} parent=11 // pred_region
          %s173 = ssub.s32 3072, 3072
          %174 = vsyncadd [#allocation7], %s173
          %s175 = sshll.u32 [#allocation6], 4
          %s176 = int_to_ptr.vmem [resolvable:$true] %s175
          %181 = dma.hbm_to_vmem [thread:$0]  %s3, 3072, %s176, [#allocation7], 128, 128, 8
        $region24: #{feature_cnn_forward.1} parent=11 // pred_fallthru
          _
        // Predicated region
        $region25: #{feature_cnn_forward.1} parent=11 // pred_check
          %p182 = pneg %p122
        $region26: #{feature_cnn_forward.1} parent=11 // pred_check_branch
          %184 = sbr.rel (%p182) target = $region28
        $region27: #{feature_cnn_forward.1} parent=11 // pred_region
          _
        $region28: #{feature_cnn_forward.1} parent=11 // pred_fallthru
          _
      $region12: #{feature_cnn_forward.1} parent=5 // pred_fallthru
        _
      %p185 = scmp.lt.s32.totalorder %s12, 2
      // Predicated region
      $region29: #{feature_cnn_forward.1} parent=5 // pred_check
        %p186 = pneg %p185
      $region30: #{feature_cnn_forward.1} parent=5 // pred_check_branch
        %188 = sbr.rel (%p186) target = $region32
      $region31: #{feature_cnn_forward.1} parent=5 // pred_region
        // Predicated region
        $region33: #{feature_cnn_forward.1} parent=31 // pred_check
          %p189 = pneg %p32
        $region34: #{feature_cnn_forward.1} parent=31 // pred_check_branch
          %191 = sbr.rel (%p189) target = $region36
        $region35: #{feature_cnn_forward.1} parent=31 // pred_region
          %p192 = scmp.lt.s32.totalorder %s12, 1
          %s193 = scalar_select %p192, %s12, 1
          %s194 = smul.addr %s193, 2
          %s195 = smul.addr %s194, 8
          %s196 = scalar_lea.vmem %s0, %s195
        $region36: #{feature_cnn_forward.1} parent=31 // pred_fallthru
          _
      $region32: #{feature_cnn_forward.1} parent=5 // pred_fallthru
        _
      %p197 = scmp.le.s32.totalorder 1, %s12
      %p198 = scmp.lt.s32.totalorder %s12, 3
      %p199 = pnand %p197, %p198
      %p200 = pneg %p199
      // Predicated region
      $region37: #{feature_cnn_forward.1} parent=5 // pred_check
        _
      $region38: #{feature_cnn_forward.1} parent=5 // pred_check_branch
        %202 = sbr.rel (%p199) target = $region40
      $region39: #{feature_cnn_forward.1} parent=5 // pred_region
        %s203 = ssub.s32 %s12, 1
        // Predicated region
        $region41: #{feature_cnn_forward.1} parent=39 // pred_check
          %p204 = pneg %p101
        $region42: #{feature_cnn_forward.1} parent=39 // pred_check_branch
          %206 = sbr.rel (%p204) target = $region44
        $region43: #{feature_cnn_forward.1} parent=39 // pred_region
          %207 = dma.done [#allocation7], 3072
        $region44: #{feature_cnn_forward.1} parent=39 // pred_fallthru
          _
        %p208 = scmp.lt.s32.totalorder %s17, 1
        %s209 = scalar_select %p208, %s17, 1
        %s210 = smul.addr %s209, 2
        %s211 = smul.addr %s210, 8
        %s212 = scalar_lea.vmem %s0, %s211
        %p213 = pneg %p38
        %p214 = pneg %p35
        %p215 = pneg %p59
        %p216 = pneg %p56
        %p217 = pneg %p80
        %p218 = pneg %p77
        %p219 = pneg %p101
        %p220 = pneg %p98
        %p221 = pneg %p122
        %p222 = pneg %p119
        %p223 = pneg %p148
        %p224 = pneg %p145
        %p225 = scmp.lt.s32.totalorder %s17, 1
        %s226 = scalar_select %p225, %s17, 1
        %s227 = smul.addr %s226, 8
        %s228 = scalar_lea.vmem %s5, %s227
        %p229 = scmp.lt.s32.totalorder %s17, 1
        %s230 = scalar_select %p229, %s17, 1
        %s231 = smul.addr %s230, 2
        %s232 = smul.addr %s231, 8
        %s233 = scalar_lea.vmem %s0, %s232
        %p234 = scmp.lt.s32.totalorder %s17, 1
        %s235 = scalar_select %p234, %s17, 1
        %s236 = smul.addr %s235, 8
        %s237 = scalar_lea.vmem %s5, %s236
        %vm238 = vcmask 31744
        %239 = vst.msk [vmem:[#allocation2] sm:$0xff] %vm238, 0.0
        %240 = vst.msk [vmem:[#allocation2 + $0x8] sm:$0xff] %vm238, 0.0
        %vm241 = vcmask 29696
        %242 = vst.msk [vmem:[#allocation2 + $0x10] sm:$0x3f] %vm241, 0.0
        %v243 = vld [vmem:[%s233] sm:$0xff]
        %v244 = vld [vmem:[%s233 + $0x8] sm:$0xff]
        %245 = vst.msk [vmem:[#allocation2 + $0x3] sm:$0xff] %vm238, %v243
        %246 = vst.msk [vmem:[#allocation2 + $0xb] sm:$0xff] %vm238, %v244
        %v247 = vld [vmem:[#allocation2] sm:$0xff]
        %v248 = vld [vmem:[#allocation2 + $0x8] sm:$0xff]
        %v249 = vld [vmem:[#allocation2 + $0x10] sm:$0x3]
        %v250 = vld [vmem:[%s1] sm:$0xf]
        %v251 = vld [vmem:[#allocation2 + $0x1] sm:$0xff]
        %v252 = vld [vmem:[#allocation2 + $0x9] sm:$0xff]
        %v253 = vld [vmem:[#allocation2 + $0x11] sm:$0x3]
        %s254 = scalar_lea.vmem %s1, 4
        %v255 = vld [vmem:[%s254] sm:$0xf]
        %v257 = vsel %vm238, %v251, 0
        %v260 = vsel %vm238, %v252, 0
        %v263 = vsel %vm238, %v253, 0
        %vm265 = vcmask 1043456
        %v267 = vsel %vm265, %v255, 0
        %269 = vmatprep.subr.mxu0 0.0
        %270 = vmatpush1.msra.mxu0 %v267
        %271 = vmatprep.subr.mxu0 0.0
        %272 = vmatpush1.msra.mxu0 0.0
        %273 = vmatprep.subr.mxu0 0.0
        %274 = vmatpush1.msra.mxu0 0.0
        %275 = vmatprep.subr.mxu0 0.0
        %276 = vmatpush1.msra.mxu0 0.0
        %277 = vmatprep.subr.mxu0 0.0
        %278 = vmatpush1.msra.mxu0 0.0
        %279 = vmatprep.subr.mxu0 0.0
        %280 = vmatpush1.msra.mxu0 0.0
        %281 = vmatprep.subr.mxu0 0.0
        %282 = vmatpush1.msra.mxu0 0.0
        %283 = vmatprep.subr.mxu0 0.0
        %284 = vmatpush1.msra.mxu0 0.0
        %285 = vmatprep.subr.mxu0 0.0
        %286 = vmatpush1.msra.mxu0 0.0
        %287 = vmatprep.subr.mxu0 0.0
        %288 = vmatpush1.msra.mxu0 0.0
        %289 = vmatprep.subr.mxu0 0.0
        %290 = vmatpush1.msra.mxu0 0.0
        %291 = vmatprep.subr.mxu0 0.0
        %292 = vmatpush1.msra.mxu0 0.0
        %293 = vmatprep.subr.mxu0 0.0
        %294 = vmatpush1.msra.mxu0 0.0
        %295 = vmatprep.subr.mxu0 0.0
        %296 = vmatpush1.msra.mxu0 0.0
        %297 = vmatprep.subr.mxu0 0.0
        %298 = vmatpush1.msra.mxu0 0.0
        %299 = vmatprep.subr.mxu0 0.0
        %300 = vmatpush1.msra.mxu0 0.0
        %301 = vmatprep.subr.mxu0 0.0
        %302 = vmatpush1.msra.mxu0 0.0
        %303 = vmatprep.subr.mxu0 0.0
        %304 = vmatpush1.msra.mxu0 0.0
        %305 = vmatprep.subr.mxu0 0.0
        %306 = vmatpush1.msra.mxu0 0.0
        %307 = vmatprep.subr.mxu0 0.0
        %308 = vmatpush1.msra.mxu0 0.0
        %309 = vmatprep.subr.mxu0 0.0
        %310 = vmatpush1.msra.mxu0 0.0
        %311 = vmatprep.subr.mxu0 0.0
        %312 = vmatpush1.msra.mxu0 0.0
        %313 = vmatprep.subr.mxu0 0.0
        %314 = vmatpush1.msra.mxu0 0.0
        %315 = vmatprep.subr.mxu0 0.0
        %316 = vmatpush1.msra.mxu0 0.0
        %317 = vmatprep.subr.mxu0 0.0
        %318 = vmatpush1.msra.mxu0 0.0
        %319 = vmatprep.subr.mxu0 0.0
        %320 = vmatpush1.msra.mxu0 0.0
        %321 = vmatprep.subr.mxu0 0.0
        %322 = vmatpush1.msra.mxu0 0.0
        %323 = vmatprep.subr.mxu0 0.0
        %324 = vmatpush1.msra.mxu0 0.0
        %325 = vmatprep.subr.mxu0 0.0
        %326 = vmatpush1.msra.mxu0 0.0
        %327 = vmatprep.subr.mxu0 0.0
        %328 = vmatpush1.msra.mxu0 0.0
        %329 = vmatprep.subr.mxu0 0.0
        %330 = vmatpush1.msra.mxu0 0.0
        %331 = vmatprep.subr.mxu0 0.0
        %332 = vmatpush1.msra.mxu0 0.0
        %333 = vmatprep.mubr.f32.mxu0 0.0
        %334 = vmatmul.mubr.f32.gmra.mrb[0].mxu0 %v257
        %v335 = vpop.f32.mrb[0].mxu0
        %v336 = vadd.f32 0.0, %v335
        %v337 = vpop.f32.mrb[0].mxu0
        %338 = vmatprep.mubr.f32.mxu0 0.0
        %339 = vmatmul.mubr.f32.gmra.mrb[0].mxu0 %v260
        %v340 = vpop.f32.mrb[0].mxu0
        %v341 = vadd.f32 0.0, %v340
        %v342 = vpop.f32.mrb[0].mxu0
        %343 = vmatprep.mubr.f32.mxu0 0.0
        %344 = vmatmul.mubr.f32.gmra.mrb[0].mxu0 %v263
        %v345 = vpop.f32.mrb[0].mxu0
        %v346 = vadd.f32 0.0, %v345
        %v347 = vpop.f32.mrb[0].mxu0
        %348 = vdwg.mxu0
        %v350 = vsel %vm238, %v247, 0
        %v353 = vsel %vm238, %v248, 0
        %v356 = vsel %vm238, %v249, 0
        %v359 = vsel %vm265, %v250, 0
        %361 = vmatprep.subr.mxu0 0.0
        %362 = vmatpush1.msra.mxu0 %v359
        %363 = vmatprep.subr.mxu0 0.0
        %364 = vmatpush1.msra.mxu0 0.0
        %365 = vmatprep.subr.mxu0 0.0
        %366 = vmatpush1.msra.mxu0 0.0
        %367 = vmatprep.subr.mxu0 0.0
        %368 = vmatpush1.msra.mxu0 0.0
        %369 = vmatprep.subr.mxu0 0.0
        %370 = vmatpush1.msra.mxu0 0.0
        %371 = vmatprep.subr.mxu0 0.0
        %372 = vmatpush1.msra.mxu0 0.0
        %373 = vmatprep.subr.mxu0 0.0
        %374 = vmatpush1.msra.mxu0 0.0
        %375 = vmatprep.subr.mxu0 0.0
        %376 = vmatpush1.msra.mxu0 0.0
        %377 = vmatprep.subr.mxu0 0.0
        %378 = vmatpush1.msra.mxu0 0.0
        %379 = vmatprep.subr.mxu0 0.0
        %380 = vmatpush1.msra.mxu0 0.0
        %381 = vmatprep.subr.mxu0 0.0
        %382 = vmatpush1.msra.mxu0 0.0
        %383 = vmatprep.subr.mxu0 0.0
        %384 = vmatpush1.msra.mxu0 0.0
        %385 = vmatprep.subr.mxu0 0.0
        %386 = vmatpush1.msra.mxu0 0.0
        %387 = vmatprep.subr.mxu0 0.0
        %388 = vmatpush1.msra.mxu0 0.0
        %389 = vmatprep.subr.mxu0 0.0
        %390 = vmatpush1.msra.mxu0 0.0
        %391 = vmatprep.subr.mxu0 0.0
        %392 = vmatpush1.msra.mxu0 0.0
        %393 = vmatprep.subr.mxu0 0.0
        %394 = vmatpush1.msra.mxu0 0.0
        %395 = vmatprep.subr.mxu0 0.0
        %396 = vmatpush1.msra.mxu0 0.0
        %397 = vmatprep.subr.mxu0 0.0
        %398 = vmatpush1.msra.mxu0 0.0
        %399 = vmatprep.subr.mxu0 0.0
        %400 = vmatpush1.msra.mxu0 0.0
        %401 = vmatprep.subr.mxu0 0.0
        %402 = vmatpush1.msra.mxu0 0.0
        %403 = vmatprep.subr.mxu0 0.0
        %404 = vmatpush1.msra.mxu0 0.0
        %405 = vmatprep.subr.mxu0 0.0
        %406 = vmatpush1.msra.mxu0 0.0
        %407 = vmatprep.subr.mxu0 0.0
        %408 = vmatpush1.msra.mxu0 0.0
        %409 = vmatprep.subr.mxu0 0.0
        %410 = vmatpush1.msra.mxu0 0.0
        %411 = vmatprep.subr.mxu0 0.0
        %412 = vmatpush1.msra.mxu0 0.0
        %413 = vmatprep.subr.mxu0 0.0
        %414 = vmatpush1.msra.mxu0 0.0
        %415 = vmatprep.subr.mxu0 0.0
        %416 = vmatpush1.msra.mxu0 0.0
        %417 = vmatprep.subr.mxu0 0.0
        %418 = vmatpush1.msra.mxu0 0.0
        %419 = vmatprep.subr.mxu0 0.0
        %420 = vmatpush1.msra.mxu0 0.0
        %421 = vmatprep.subr.mxu0 0.0
        %422 = vmatpush1.msra.mxu0 0.0
        %423 = vmatprep.subr.mxu0 0.0
        %424 = vmatpush1.msra.mxu0 0.0
        %425 = vmatprep.mubr.f32.mxu0 0.0
        %426 = vmatmul.mubr.f32.gmra.mrb[0].mxu0 %v350
        %v427 = vpop.f32.mrb[0].mxu0
        %v428 = vadd.f32 %v336, %v427
        %v429 = vpop.f32.mrb[0].mxu0
        %430 = vmatprep.mubr.f32.mxu0 0.0
        %431 = vmatmul.mubr.f32.gmra.mrb[0].mxu0 %v353
        %v432 = vpop.f32.mrb[0].mxu0
        %v433 = vadd.f32 %v341, %v432
        %v434 = vpop.f32.mrb[0].mxu0
        %435 = vmatprep.mubr.f32.mxu0 0.0
        %436 = vmatmul.mubr.f32.gmra.mrb[0].mxu0 %v356
        %v437 = vpop.f32.mrb[0].mxu0
        %v438 = vadd.f32 %v346, %v437
        %v439 = vpop.f32.mrb[0].mxu0
        %440 = vdwg.mxu0
        %v441 = vld [vmem:[#allocation2 + $0x2] sm:$0xff]
        %v442 = vld [vmem:[#allocation2 + $0xa] sm:$0xff]
        %v443 = vld [vmem:[#allocation2 + $0x12] sm:$0x3]
        %s444 = scalar_lea.vmem %s1, 8
        %v445 = vld [vmem:[%s444] sm:$0xf]
        %v447 = vsel %vm238, %v441, 0
        %v450 = vsel %vm238, %v442, 0
        %v453 = vsel %vm238, %v443, 0
        %v456 = vsel %vm265, %v445, 0
        %458 = vmatprep.subr.mxu0 0.0
        %459 = vmatpush1.msra.mxu0 %v456
        %460 = vmatprep.subr.mxu0 0.0
        %461 = vmatpush1.msra.mxu0 0.0
        %462 = vmatprep.subr.mxu0 0.0
        %463 = vmatpush1.msra.mxu0 0.0
        %464 = vmatprep.subr.mxu0 0.0
        %465 = vmatpush1.msra.mxu0 0.0
        %466 = vmatprep.subr.mxu0 0.0
        %467 = vmatpush1.msra.mxu0 0.0
        %468 = vmatprep.subr.mxu0 0.0
        %469 = vmatpush1.msra.mxu0 0.0
        %470 = vmatprep.subr.mxu0 0.0
        %471 = vmatpush1.msra.mxu0 0.0
        %472 = vmatprep.subr.mxu0 0.0
        %473 = vmatpush1.msra.mxu0 0.0
        %474 = vmatprep.subr.mxu0 0.0
        %475 = vmatpush1.msra.mxu0 0.0
        %476 = vmatprep.subr.mxu0 0.0
        %477 = vmatpush1.msra.mxu0 0.0
        %478 = vmatprep.subr.mxu0 0.0
        %479 = vmatpush1.msra.mxu0 0.0
        %480 = vmatprep.subr.mxu0 0.0
        %481 = vmatpush1.msra.mxu0 0.0
        %482 = vmatprep.subr.mxu0 0.0
        %483 = vmatpush1.msra.mxu0 0.0
        %484 = vmatprep.subr.mxu0 0.0
        %485 = vmatpush1.msra.mxu0 0.0
        %486 = vmatprep.subr.mxu0 0.0
        %487 = vmatpush1.msra.mxu0 0.0
        %488 = vmatprep.subr.mxu0 0.0
        %489 = vmatpush1.msra.mxu0 0.0
        %490 = vmatprep.subr.mxu0 0.0
        %491 = vmatpush1.msra.mxu0 0.0
        %492 = vmatprep.subr.mxu0 0.0
        %493 = vmatpush1.msra.mxu0 0.0
        %494 = vmatprep.subr.mxu0 0.0
        %495 = vmatpush1.msra.mxu0 0.0
        %496 = vmatprep.subr.mxu0 0.0
        %497 = vmatpush1.msra.mxu0 0.0
        %498 = vmatprep.subr.mxu0 0.0
        %499 = vmatpush1.msra.mxu0 0.0
        %500 = vmatprep.subr.mxu0 0.0
        %501 = vmatpush1.msra.mxu0 0.0
        %502 = vmatprep.subr.mxu0 0.0
        %503 = vmatpush1.msra.mxu0 0.0
        %504 = vmatprep.subr.mxu0 0.0
        %505 = vmatpush1.msra.mxu0 0.0
        %506 = vmatprep.subr.mxu0 0.0
        %507 = vmatpush1.msra.mxu0 0.0
        %508 = vmatprep.subr.mxu0 0.0
        %509 = vmatpush1.msra.mxu0 0.0
        %510 = vmatprep.subr.mxu0 0.0
        %511 = vmatpush1.msra.mxu0 0.0
        %512 = vmatprep.subr.mxu0 0.0
        %513 = vmatpush1.msra.mxu0 0.0
        %514 = vmatprep.subr.mxu0 0.0
        %515 = vmatpush1.msra.mxu0 0.0
        %516 = vmatprep.subr.mxu0 0.0
        %517 = vmatpush1.msra.mxu0 0.0
        %518 = vmatprep.subr.mxu0 0.0
        %519 = vmatpush1.msra.mxu0 0.0
        %520 = vmatprep.subr.mxu0 0.0
        %521 = vmatpush1.msra.mxu0 0.0
        %522 = vmatprep.mubr.f32.mxu0 0.0
        %523 = vmatmul.mubr.f32.gmra.mrb[0].mxu0 %v447
        %v524 = vpop.f32.mrb[0].mxu0
        %v525 = vadd.f32 0.0, %v524
        %v526 = vpop.f32.mrb[0].mxu0
        %527 = vmatprep.mubr.f32.mxu0 0.0
        %528 = vmatmul.mubr.f32.gmra.mrb[0].mxu0 %v450
        %v529 = vpop.f32.mrb[0].mxu0
        %v530 = vadd.f32 0.0, %v529
        %v531 = vpop.f32.mrb[0].mxu0
        %532 = vmatprep.mubr.f32.mxu0 0.0
        %533 = vmatmul.mubr.f32.gmra.mrb[0].mxu0 %v453
        %v534 = vpop.f32.mrb[0].mxu0
        %v535 = vadd.f32 0.0, %v534
        %v536 = vpop.f32.mrb[0].mxu0
        %537 = vdwg.mxu0
        %v538 = vadd.f32 %v428, %v525
        %v539 = vadd.f32 %v433, %v530
        %v540 = vadd.f32 %v438, %v535
        %v541 = vld [vmem:[#allocation2 + $0x3] sm:$0xff]
        %v542 = vld [vmem:[#allocation2 + $0xb] sm:$0xff]
        %v543 = vld [vmem:[#allocation2 + $0x13] sm:$0x3]
        %s544 = scalar_lea.vmem %s1, 12
        %v545 = vld [vmem:[%s544] sm:$0xf]
        %v547 = vsel %vm238, %v541, 0
        %v550 = vsel %vm238, %v542, 0
        %v553 = vsel %vm238, %v543, 0
        %v556 = vsel %vm265, %v545, 0
        %558 = vmatprep.subr.mxu0 0.0
        %559 = vmatpush1.msra.mxu0 %v556
        %560 = vmatprep.subr.mxu0 0.0
        %561 = vmatpush1.msra.mxu0 0.0
        %562 = vmatprep.subr.mxu0 0.0
        %563 = vmatpush1.msra.mxu0 0.0
        %564 = vmatprep.subr.mxu0 0.0
        %565 = vmatpush1.msra.mxu0 0.0
        %566 = vmatprep.subr.mxu0 0.0
        %567 = vmatpush1.msra.mxu0 0.0
        %568 = vmatprep.subr.mxu0 0.0
        %569 = vmatpush1.msra.mxu0 0.0
        %570 = vmatprep.subr.mxu0 0.0
        %571 = vmatpush1.msra.mxu0 0.0
        %572 = vmatprep.subr.mxu0 0.0
        %573 = vmatpush1.msra.mxu0 0.0
        %574 = vmatprep.subr.mxu0 0.0
        %575 = vmatpush1.msra.mxu0 0.0
        %576 = vmatprep.subr.mxu0 0.0
        %577 = vmatpush1.msra.mxu0 0.0
        %578 = vmatprep.subr.mxu0 0.0
        %579 = vmatpush1.msra.mxu0 0.0
        %580 = vmatprep.subr.mxu0 0.0
        %581 = vmatpush1.msra.mxu0 0.0
        %582 = vmatprep.subr.mxu0 0.0
        %583 = vmatpush1.msra.mxu0 0.0
        %584 = vmatprep.subr.mxu0 0.0
        %585 = vmatpush1.msra.mxu0 0.0
        %586 = vmatprep.subr.mxu0 0.0
        %587 = vmatpush1.msra.mxu0 0.0
        %588 = vmatprep.subr.mxu0 0.0
        %589 = vmatpush1.msra.mxu0 0.0
        %590 = vmatprep.subr.mxu0 0.0
        %591 = vmatpush1.msra.mxu0 0.0
        %592 = vmatprep.subr.mxu0 0.0
        %593 = vmatpush1.msra.mxu0 0.0
        %594 = vmatprep.subr.mxu0 0.0
        %595 = vmatpush1.msra.mxu0 0.0
        %596 = vmatprep.subr.mxu0 0.0
        %597 = vmatpush1.msra.mxu0 0.0
        %598 = vmatprep.subr.mxu0 0.0
        %599 = vmatpush1.msra.mxu0 0.0
        %600 = vmatprep.subr.mxu0 0.0
        %601 = vmatpush1.msra.mxu0 0.0
        %602 = vmatprep.subr.mxu0 0.0
        %603 = vmatpush1.msra.mxu0 0.0
        %604 = vmatprep.subr.mxu0 0.0
        %605 = vmatpush1.msra.mxu0 0.0
        %606 = vmatprep.subr.mxu0 0.0
        %607 = vmatpush1.msra.mxu0 0.0
        %608 = vmatprep.subr.mxu0 0.0
        %609 = vmatpush1.msra.mxu0 0.0
        %610 = vmatprep.subr.mxu0 0.0
        %611 = vmatpush1.msra.mxu0 0.0
        %612 = vmatprep.subr.mxu0 0.0
        %613 = vmatpush1.msra.mxu0 0.0
        %614 = vmatprep.subr.mxu0 0.0
        %615 = vmatpush1.msra.mxu0 0.0
        %616 = vmatprep.subr.mxu0 0.0
        %617 = vmatpush1.msra.mxu0 0.0
        %618 = vmatprep.subr.mxu0 0.0
        %619 = vmatpush1.msra.mxu0 0.0
        %620 = vmatprep.subr.mxu0 0.0
        %621 = vmatpush1.msra.mxu0 0.0
        %622 = vmatprep.mubr.f32.mxu0 0.0
        %623 = vmatmul.mubr.f32.gmra.mrb[0].mxu0 %v547
        %v624 = vpop.f32.mrb[0].mxu0
        %v625 = vadd.f32 0.0, %v624
        %v626 = vpop.f32.mrb[0].mxu0
        %627 = vmatprep.mubr.f32.mxu0 0.0
        %628 = vmatmul.mubr.f32.gmra.mrb[0].mxu0 %v550
        %v629 = vpop.f32.mrb[0].mxu0
        %v630 = vadd.f32 0.0, %v629
        %v631 = vpop.f32.mrb[0].mxu0
        %632 = vmatprep.mubr.f32.mxu0 0.0
        %633 = vmatmul.mubr.f32.gmra.mrb[0].mxu0 %v553
        %v634 = vpop.f32.mrb[0].mxu0
        %v635 = vadd.f32 0.0, %v634
        %v636 = vpop.f32.mrb[0].mxu0
        %637 = vdwg.mxu0
        %v638 = vadd.f32 %v538, %v625
        %v639 = vadd.f32 %v539, %v630
        %v640 = vadd.f32 %v540, %v635
        %v641 = vld [vmem:[#allocation2 + $0x4] sm:$0xff]
        %v642 = vld [vmem:[#allocation2 + $0xc] sm:$0xff]
        %v643 = vld [vmem:[#allocation2 + $0x14] sm:$0x3]
        %s644 = scalar_lea.vmem %s1, 16
        %v645 = vld [vmem:[%s644] sm:$0xf]
        %v647 = vsel %vm238, %v641, 0
        %v650 = vsel %vm238, %v642, 0
        %v653 = vsel %vm238, %v643, 0
        %v656 = vsel %vm265, %v645, 0
        %658 = vmatprep.subr.mxu0 0.0
        %659 = vmatpush1.msra.mxu0 %v656
        %660 = vmatprep.subr.mxu0 0.0
        %661 = vmatpush1.msra.mxu0 0.0
        %662 = vmatprep.subr.mxu0 0.0
        %663 = vmatpush1.msra.mxu0 0.0
        %664 = vmatprep.subr.mxu0 0.0
        %665 = vmatpush1.msra.mxu0 0.0
        %666 = vmatprep.subr.mxu0 0.0
        %667 = vmatpush1.msra.mxu0 0.0
        %668 = vmatprep.subr.mxu0 0.0
        %669 = vmatpush1.msra.mxu0 0.0
        %670 = vmatprep.subr.mxu0 0.0
        %671 = vmatpush1.msra.mxu0 0.0
        %672 = vmatprep.subr.mxu0 0.0
        %673 = vmatpush1.msra.mxu0 0.0
        %674 = vmatprep.subr.mxu0 0.0
        %675 = vmatpush1.msra.mxu0 0.0
        %676 = vmatprep.subr.mxu0 0.0
        %677 = vmatpush1.msra.mxu0 0.0
        %678 = vmatprep.subr.mxu0 0.0
        %679 = vmatpush1.msra.mxu0 0.0
        %680 = vmatprep.subr.mxu0 0.0
        %681 = vmatpush1.msra.mxu0 0.0
        %682 = vmatprep.subr.mxu0 0.0
        %683 = vmatpush1.msra.mxu0 0.0
        %684 = vmatprep.subr.mxu0 0.0
        %685 = vmatpush1.msra.mxu0 0.0
        %686 = vmatprep.subr.mxu0 0.0
        %687 = vmatpush1.msra.mxu0 0.0
        %688 = vmatprep.subr.mxu0 0.0
        %689 = vmatpush1.msra.mxu0 0.0
        %690 = vmatprep.subr.mxu0 0.0
        %691 = vmatpush1.msra.mxu0 0.0
        %692 = vmatprep.subr.mxu0 0.0
        %693 = vmatpush1.msra.mxu0 0.0
        %694 = vmatprep.subr.mxu0 0.0
        %695 = vmatpush1.msra.mxu0 0.0
        %696 = vmatprep.subr.mxu0 0.0
        %697 = vmatpush1.msra.mxu0 0.0
        %698 = vmatprep.subr.mxu0 0.0
        %699 = vmatpush1.msra.mxu0 0.0
        %700 = vmatprep.subr.mxu0 0.0
        %701 = vmatpush1.msra.mxu0 0.0
        %702 = vmatprep.subr.mxu0 0.0
        %703 = vmatpush1.msra.mxu0 0.0
        %704 = vmatprep.subr.mxu0 0.0
        %705 = vmatpush1.msra.mxu0 0.0
        %706 = vmatprep.subr.mxu0 0.0
        %707 = vmatpush1.msra.mxu0 0.0
        %708 = vmatprep.subr.mxu0 0.0
        %709 = vmatpush1.msra.mxu0 0.0
        %710 = vmatprep.subr.mxu0 0.0
        %711 = vmatpush1.msra.mxu0 0.0
        %712 = vmatprep.subr.mxu0 0.0
        %713 = vmatpush1.msra.mxu0 0.0
        %714 = vmatprep.subr.mxu0 0.0
        %715 = vmatpush1.msra.mxu0 0.0
        %716 = vmatprep.subr.mxu0 0.0
        %717 = vmatpush1.msra.mxu0 0.0
        %718 = vmatprep.subr.mxu0 0.0
        %719 = vmatpush1.msra.mxu0 0.0
        %720 = vmatprep.subr.mxu0 0.0
        %721 = vmatpush1.msra.mxu0 0.0
        %722 = vmatprep.mubr.f32.mxu0 0.0
        %723 = vmatmul.mubr.f32.gmra.mrb[0].mxu0 %v647
        %v724 = vpop.f32.mrb[0].mxu0
        %v725 = vadd.f32 0.0, %v724
        %v726 = vpop.f32.mrb[0].mxu0
        %727 = vmatprep.mubr.f32.mxu0 0.0
        %728 = vmatmul.mubr.f32.gmra.mrb[0].mxu0 %v650
        %v729 = vpop.f32.mrb[0].mxu0
        %v730 = vadd.f32 0.0, %v729
        %v731 = vpop.f32.mrb[0].mxu0
        %732 = vmatprep.mubr.f32.mxu0 0.0
        %733 = vmatmul.mubr.f32.gmra.mrb[0].mxu0 %v653
        %v734 = vpop.f32.mrb[0].mxu0
        %v735 = vadd.f32 0.0, %v734
        %v736 = vpop.f32.mrb[0].mxu0
        %737 = vdwg.mxu0
        %v738 = vadd.f32 %v638, %v725
        %v739 = vadd.f32 %v639, %v730
        %v740 = vadd.f32 %v640, %v735
        %v741 = vld [vmem:[%s2] sm:$0x3]
        %v742 = vlaneseq
        %v743 = vshrl.u32 %v742, 7
        %v744 = vsub.s32 0, %v743
        %v745 = vrot.slane %v741, %v744
        %v746 = vmul.f32 %v738, %v745
        %v747 = vmul.f32 %v739, %v745
        %v748 = vmul.f32 %v740, %v745
        %v749 = vlaneseq
        %v750 = vshrl.u32 %v749, 7
        %v751 = vsub.s32 1, %v750
        %v752 = vrot.slane %v741, %v751
        %v753 = vadd.f32 %v746, %v752
        %v754 = vadd.f32 %v747, %v752
        %v755 = vadd.f32 %v748, %v752
        %v756 = vmax.f32 %v753, 0.0
        %v757 = vmax.f32 %v754, 0.0
        %v758 = vmax.f32 %v755, 0.0
        %vm759 = vcmask 523264
        %760 = vst.msk [vmem:[#allocation3] sm:$0xff] %vm759, %v756
        %761 = vst.msk [vmem:[#allocation3 + $0x8] sm:$0xff] %vm759, %v757
        %vm762 = vcmask 517120
        %763 = vst.msk [vmem:[#allocation3 + $0x10] sm:$0x3] %vm762, %v758
        %v764 = vld [vmem:[#allocation3] ss:$2 sm:$0xff]
        %s765 = scalar_lea.vmem [#allocation3], 16
        %v766 = vld [vmem:[%s765] ss:$2 sm:$0x1]
        %s767 = scalar_lea.vmem [#allocation3], 1
        %v768 = vld [vmem:[%s767] ss:$2 sm:$0xff]
        %s769 = scalar_lea.vmem [#allocation3], 17
        %v770 = vld [vmem:[%s769] ss:$2 sm:$0x1]
        %v771 = vmax.f32 %v764, %v768
        %v772 = vmax.f32 %v766, %v770
        %773 = vst.msk [vmem:[#allocation4] sm:$0xff] %vm759, 0.0
        %vm774 = vcmask 520192
        %775 = vst.msk [vmem:[#allocation4 + $0x8] sm:$0x1f] %vm774, 0.0
        %776 = vst.msk [vmem:[#allocation4 + $0x2] sm:$0xff] %vm759, %v771
        %vm777 = vcmask 516096
        %778 = vst.msk [vmem:[#allocation4 + $0xa] sm:$0x1] %vm777, %v772
        %v779 = vld [vmem:[#allocation4] sm:$0xff]
        %v780 = vld [vmem:[#allocation4 + $0x8] sm:$0x7]
        %v781 = vld [vmem:[#allocation6] sm:$0xff]
        %v782 = vld [vmem:[#allocation6 + $0x8] sm:$0xff]
        %v783 = vld [vmem:[#allocation6 + $0x10] sm:$0xff]
        %v784 = vld [vmem:[#allocation6 + $0x18] sm:$0xff]
        %v785 = vld [vmem:[#allocation6 + $0x20] sm:$0xff]
        %v786 = vld [vmem:[#allocation6 + $0x28] sm:$0xff]
        %v787 = vld [vmem:[#allocation6 + $0x30] sm:$0xff]
        %v788 = vld [vmem:[#allocation6 + $0x38] sm:$0xff]
        %v789 = vld [vmem:[#allocation4 + $0x1] sm:$0xff]
        %v790 = vld [vmem:[#allocation4 + $0x9] sm:$0x7]
        %s791 = scalar_lea.vmem [#allocation6], 64
        %v792 = vld [vmem:[%s791] sm:$0xff]
        %v793 = vld [vmem:[%s791 + $0x8] sm:$0xff]
        %v794 = vld [vmem:[%s791 + $0x10] sm:$0xff]
        %v795 = vld [vmem:[%s791 + $0x18] sm:$0xff]
        %v796 = vld [vmem:[%s791 + $0x20] sm:$0xff]
        %v797 = vld [vmem:[%s791 + $0x28] sm:$0xff]
        %v798 = vld [vmem:[%s791 + $0x30] sm:$0xff]
        %v799 = vld [vmem:[%s791 + $0x38] sm:$0xff]
        %v801 = vsel %vm759, %v789, 0
        %v804 = vsel %vm759, %v790, 0
        %806 = vmatprep.subr.mxu0 0.0
        %807 = vmatpush1.msra.mxu0 %v792
        %808 = vmatprep.subr.mxu0 0.0
        %809 = vmatpush1.msra.mxu0 %v793
        %810 = vmatprep.subr.mxu0 0.0
        %811 = vmatpush1.msra.mxu0 %v794
        %812 = vmatprep.subr.mxu0 0.0
        %813 = vmatpush1.msra.mxu0 %v795
        %814 = vmatprep.subr.mxu0 0.0
        %815 = vmatpush1.msra.mxu0 %v796
        %816 = vmatprep.subr.mxu0 0.0
        %817 = vmatpush1.msra.mxu0 %v797
        %818 = vmatprep.subr.mxu0 0.0
        %819 = vmatpush1.msra.mxu0 %v798
        %820 = vmatprep.subr.mxu0 0.0
        %821 = vmatpush1.msra.mxu0 %v799
        %822 = vmatprep.subr.mxu0 0.0
        %823 = vmatpush1.msra.mxu0 0.0
        %824 = vmatprep.subr.mxu0 0.0
        %825 = vmatpush1.msra.mxu0 0.0
        %826 = vmatprep.subr.mxu0 0.0
        %827 = vmatpush1.msra.mxu0 0.0
        %828 = vmatprep.subr.mxu0 0.0
        %829 = vmatpush1.msra.mxu0 0.0
        %830 = vmatprep.subr.mxu0 0.0
        %831 = vmatpush1.msra.mxu0 0.0
        %832 = vmatprep.subr.mxu0 0.0
        %833 = vmatpush1.msra.mxu0 0.0
        %834 = vmatprep.subr.mxu0 0.0
        %835 = vmatpush1.msra.mxu0 0.0
        %836 = vmatprep.subr.mxu0 0.0
        %837 = vmatpush1.msra.mxu0 0.0
        %838 = vmatprep.subr.mxu0 0.0
        %839 = vmatpush1.msra.mxu0 0.0
        %840 = vmatprep.subr.mxu0 0.0
        %841 = vmatpush1.msra.mxu0 0.0
        %842 = vmatprep.subr.mxu0 0.0
        %843 = vmatpush1.msra.mxu0 0.0
        %844 = vmatprep.subr.mxu0 0.0
        %845 = vmatpush1.msra.mxu0 0.0
        %846 = vmatprep.subr.mxu0 0.0
        %847 = vmatpush1.msra.mxu0 0.0
        %848 = vmatprep.subr.mxu0 0.0
        %849 = vmatpush1.msra.mxu0 0.0
        %850 = vmatprep.subr.mxu0 0.0
        %851 = vmatpush1.msra.mxu0 0.0
        %852 = vmatprep.subr.mxu0 0.0
        %853 = vmatpush1.msra.mxu0 0.0
        %854 = vmatprep.subr.mxu0 0.0
        %855 = vmatpush1.msra.mxu0 0.0
        %856 = vmatprep.subr.mxu0 0.0
        %857 = vmatpush1.msra.mxu0 0.0
        %858 = vmatprep.subr.mxu0 0.0
        %859 = vmatpush1.msra.mxu0 0.0
        %860 = vmatprep.subr.mxu0 0.0
        %861 = vmatpush1.msra.mxu0 0.0
        %862 = vmatprep.subr.mxu0 0.0
        %863 = vmatpush1.msra.mxu0 0.0
        %864 = vmatprep.subr.mxu0 0.0
        %865 = vmatpush1.msra.mxu0 0.0
        %866 = vmatprep.subr.mxu0 0.0
        %867 = vmatpush1.msra.mxu0 0.0
        %868 = vmatprep.subr.mxu0 0.0
        %869 = vmatpush1.msra.mxu0 0.0
        %870 = vmatprep.mubr.f32.mxu0 0.0
        %871 = vmatmul.mubr.f32.gmra.mrb[0].mxu0 %v801
        %v872 = vpop.f32.mrb[0].mxu0
        %v873 = vadd.f32 0.0, %v872
        %v874 = vpop.f32.mrb[0].mxu0
        %875 = vmatprep.mubr.f32.mxu0 0.0
        %876 = vmatmul.mubr.f32.gmra.mrb[0].mxu0 %v804
        %v877 = vpop.f32.mrb[0].mxu0
        %v878 = vadd.f32 0.0, %v877
        %v879 = vpop.f32.mrb[0].mxu0
        %880 = vdwg.mxu0
        %v882 = vsel %vm759, %v779, 0
        %v885 = vsel %vm759, %v780, 0
        %887 = vmatprep.subr.mxu0 0.0
        %888 = vmatpush1.msra.mxu0 %v781
        %889 = vmatprep.subr.mxu0 0.0
        %890 = vmatpush1.msra.mxu0 %v782
        %891 = vmatprep.subr.mxu0 0.0
        %892 = vmatpush1.msra.mxu0 %v783
        %893 = vmatprep.subr.mxu0 0.0
        %894 = vmatpush1.msra.mxu0 %v784
        %895 = vmatprep.subr.mxu0 0.0
        %896 = vmatpush1.msra.mxu0 %v785
        %897 = vmatprep.subr.mxu0 0.0
        %898 = vmatpush1.msra.mxu0 %v786
        %899 = vmatprep.subr.mxu0 0.0
        %900 = vmatpush1.msra.mxu0 %v787
        %901 = vmatprep.subr.mxu0 0.0
        %902 = vmatpush1.msra.mxu0 %v788
        %903 = vmatprep.subr.mxu0 0.0
        %904 = vmatpush1.msra.mxu0 0.0
        %905 = vmatprep.subr.mxu0 0.0
        %906 = vmatpush1.msra.mxu0 0.0
        %907 = vmatprep.subr.mxu0 0.0
        %908 = vmatpush1.msra.mxu0 0.0
        %909 = vmatprep.subr.mxu0 0.0
        %910 = vmatpush1.msra.mxu0 0.0
        %911 = vmatprep.subr.mxu0 0.0
        %912 = vmatpush1.msra.mxu0 0.0
        %913 = vmatprep.subr.mxu0 0.0
        %914 = vmatpush1.msra.mxu0 0.0
        %915 = vmatprep.subr.mxu0 0.0
        %916 = vmatpush1.msra.mxu0 0.0
        %917 = vmatprep.subr.mxu0 0.0
        %918 = vmatpush1.msra.mxu0 0.0
        %919 = vmatprep.subr.mxu0 0.0
        %920 = vmatpush1.msra.mxu0 0.0
        %921 = vmatprep.subr.mxu0 0.0
        %922 = vmatpush1.msra.mxu0 0.0
        %923 = vmatprep.subr.mxu0 0.0
        %924 = vmatpush1.msra.mxu0 0.0
        %925 = vmatprep.subr.mxu0 0.0
        %926 = vmatpush1.msra.mxu0 0.0
        %927 = vmatprep.subr.mxu0 0.0
        %928 = vmatpush1.msra.mxu0 0.0
        %929 = vmatprep.subr.mxu0 0.0
        %930 = vmatpush1.msra.mxu0 0.0
        %931 = vmatprep.subr.mxu0 0.0
        %932 = vmatpush1.msra.mxu0 0.0
        %933 = vmatprep.subr.mxu0 0.0
        %934 = vmatpush1.msra.mxu0 0.0
        %935 = vmatprep.subr.mxu0 0.0
        %936 = vmatpush1.msra.mxu0 0.0
        %937 = vmatprep.subr.mxu0 0.0
        %938 = vmatpush1.msra.mxu0 0.0
        %939 = vmatprep.subr.mxu0 0.0
        %940 = vmatpush1.msra.mxu0 0.0
        %941 = vmatprep.subr.mxu0 0.0
        %942 = vmatpush1.msra.mxu0 0.0
        %943 = vmatprep.subr.mxu0 0.0
        %944 = vmatpush1.msra.mxu0 0.0
        %945 = vmatprep.subr.mxu0 0.0
        %946 = vmatpush1.msra.mxu0 0.0
        %947 = vmatprep.subr.mxu0 0.0
        %948 = vmatpush1.msra.mxu0 0.0
        %949 = vmatprep.subr.mxu0 0.0
        %950 = vmatpush1.msra.mxu0 0.0
        %951 = vmatprep.mubr.f32.mxu0 0.0
        %952 = vmatmul.mubr.f32.gmra.mrb[0].mxu0 %v882
        %v953 = vpop.f32.mrb[0].mxu0
        %v954 = vadd.f32 %v873, %v953
        %v955 = vpop.f32.mrb[0].mxu0
        %956 = vmatprep.mubr.f32.mxu0 0.0
        %957 = vmatmul.mubr.f32.gmra.mrb[0].mxu0 %v885
        %v958 = vpop.f32.mrb[0].mxu0
        %v959 = vadd.f32 %v878, %v958
        %v960 = vpop.f32.mrb[0].mxu0
        %961 = vdwg.mxu0
        %v962 = vld [vmem:[#allocation4 + $0x2] sm:$0xff]
        %v963 = vld [vmem:[#allocation4 + $0xa] sm:$0x7]
        %s964 = scalar_lea.vmem [#allocation6], 128
        %v965 = vld [vmem:[%s964] sm:$0xff]
        %v966 = vld [vmem:[%s964 + $0x8] sm:$0xff]
        %v967 = vld [vmem:[%s964 + $0x10] sm:$0xff]
        %v968 = vld [vmem:[%s964 + $0x18] sm:$0xff]
        %v969 = vld [vmem:[%s964 + $0x20] sm:$0xff]
        %v970 = vld [vmem:[%s964 + $0x28] sm:$0xff]
        %v971 = vld [vmem:[%s964 + $0x30] sm:$0xff]
        %v972 = vld [vmem:[%s964 + $0x38] sm:$0xff]
        %v974 = vsel %vm759, %v962, 0
        %v977 = vsel %vm759, %v963, 0
        %979 = vmatprep.subr.mxu0 0.0
        %980 = vmatpush1.msra.mxu0 %v965
        %981 = vmatprep.subr.mxu0 0.0
        %982 = vmatpush1.msra.mxu0 %v966
        %983 = vmatprep.subr.mxu0 0.0
        %984 = vmatpush1.msra.mxu0 %v967
        %985 = vmatprep.subr.mxu0 0.0
        %986 = vmatpush1.msra.mxu0 %v968
        %987 = vmatprep.subr.mxu0 0.0
        %988 = vmatpush1.msra.mxu0 %v969
        %989 = vmatprep.subr.mxu0 0.0
        %990 = vmatpush1.msra.mxu0 %v970
        %991 = vmatprep.subr.mxu0 0.0
        %992 = vmatpush1.msra.mxu0 %v971
        %993 = vmatprep.subr.mxu0 0.0
        %994 = vmatpush1.msra.mxu0 %v972
        %995 = vmatprep.subr.mxu0 0.0
        %996 = vmatpush1.msra.mxu0 0.0
        %997 = vmatprep.subr.mxu0 0.0
        %998 = vmatpush1.msra.mxu0 0.0
        %999 = vmatprep.subr.mxu0 0.0
        %1000 = vmatpush1.msra.mxu0 0.0
        %1001 = vmatprep.subr.mxu0 0.0
        %1002 = vmatpush1.msra.mxu0 0.0
        %1003 = vmatprep.subr.mxu0 0.0
        %1004 = vmatpush1.msra.mxu0 0.0
        %1005 = vmatprep.subr.mxu0 0.0
        %1006 = vmatpush1.msra.mxu0 0.0
        %1007 = vmatprep.subr.mxu0 0.0
        %1008 = vmatpush1.msra.mxu0 0.0
        %1009 = vmatprep.subr.mxu0 0.0
        %1010 = vmatpush1.msra.mxu0 0.0
        %1011 = vmatprep.subr.mxu0 0.0
        %1012 = vmatpush1.msra.mxu0 0.0
        %1013 = vmatprep.subr.mxu0 0.0
        %1014 = vmatpush1.msra.mxu0 0.0
        %1015 = vmatprep.subr.mxu0 0.0
        %1016 = vmatpush1.msra.mxu0 0.0
        %1017 = vmatprep.subr.mxu0 0.0
        %1018 = vmatpush1.msra.mxu0 0.0
        %1019 = vmatprep.subr.mxu0 0.0
        %1020 = vmatpush1.msra.mxu0 0.0
        %1021 = vmatprep.subr.mxu0 0.0
        %1022 = vmatpush1.msra.mxu0 0.0
        %1023 = vmatprep.subr.mxu0 0.0
        %1024 = vmatpush1.msra.mxu0 0.0
        %1025 = vmatprep.subr.mxu0 0.0
        %1026 = vmatpush1.msra.mxu0 0.0
        %1027 = vmatprep.subr.mxu0 0.0
        %1028 = vmatpush1.msra.mxu0 0.0
        %1029 = vmatprep.subr.mxu0 0.0
        %1030 = vmatpush1.msra.mxu0 0.0
        %1031 = vmatprep.subr.mxu0 0.0
        %1032 = vmatpush1.msra.mxu0 0.0
        %1033 = vmatprep.subr.mxu0 0.0
        %1034 = vmatpush1.msra.mxu0 0.0
        %1035 = vmatprep.subr.mxu0 0.0
        %1036 = vmatpush1.msra.mxu0 0.0
        %1037 = vmatprep.subr.mxu0 0.0
        %1038 = vmatpush1.msra.mxu0 0.0
        %1039 = vmatprep.subr.mxu0 0.0
        %1040 = vmatpush1.msra.mxu0 0.0
        %1041 = vmatprep.subr.mxu0 0.0
        %1042 = vmatpush1.msra.mxu0 0.0
        %1043 = vmatprep.mubr.f32.mxu0 0.0
        %1044 = vmatmul.mubr.f32.gmra.mrb[0].mxu0 %v974
        %v1045 = vpop.f32.mrb[0].mxu0
        %v1046 = vadd.f32 0.0, %v1045
        %v1047 = vpop.f32.mrb[0].mxu0
        %1048 = vmatprep.mubr.f32.mxu0 0.0
        %1049 = vmatmul.mubr.f32.gmra.mrb[0].mxu0 %v977
        %v1050 = vpop.f32.mrb[0].mxu0
        %v1051 = vadd.f32 0.0, %v1050
        %v1052 = vpop.f32.mrb[0].mxu0
        %1053 = vdwg.mxu0
        %v1054 = vadd.f32 %v954, %v1046
        %v1055 = vadd.f32 %v959, %v1051
        %v1056 = vld [vmem:[%s4] sm:$0x3]
        %v1057 = vlaneseq
        %v1058 = vshrl.u32 %v1057, 7
        %v1059 = vsub.s32 0, %v1058
        %v1060 = vrot.slane %v1056, %v1059
        %v1061 = vmul.f32 %v1054, %v1060
        %v1062 = vmul.f32 %v1055, %v1060
        %v1063 = vlaneseq
        %v1064 = vshrl.u32 %v1063, 7
        %v1065 = vsub.s32 1, %v1064
        %v1066 = vrot.slane %v1056, %v1065
        %v1067 = vadd.f32 %v1061, %v1066
        %v1068 = vadd.f32 %v1062, %v1066
        %v1069 = vmax.f32 %v1067, 0.0
        %v1070 = vmax.f32 %v1068, 0.0
        %1071 = vst [vmem:[#allocation5] sm:$0xff] %v1069
        %1072 = vst [vmem:[#allocation5 + $0x8] sm:$0x7] %v1070
        %v1073 = vld [vmem:[#allocation5] ss:$2 sm:$0x1f]
        %s1074 = scalar_lea.vmem [#allocation5], 1
        %v1075 = vld [vmem:[%s1074] ss:$2 sm:$0x1f]
        %v1076 = vmax.f32 %v1073, %v1075
        %1077 = vst [vmem:[%s237] sm:$0x1f] %v1076
        %p1078 = scmp.lt.s32.totalorder %s17, 1
        %s1079 = scalar_select %p1078, %s17, 1
        %s1080 = smul.addr %s1079, 8
        %s1081 = scalar_lea.vmem %s5, %s1080
        // Predicated region
        $region45: #{feature_cnn_forward.1} parent=39 // pred_check
          %p1082 = pneg %p145
        $region46: #{feature_cnn_forward.1} parent=39 // pred_check_branch
          %1084 = sbr.rel (%p1082) target = $region48
        $region47: #{feature_cnn_forward.1} parent=39 // pred_region
          _
        $region48: #{feature_cnn_forward.1} parent=39 // pred_fallthru
          _
      $region40: #{feature_cnn_forward.1} parent=5 // pred_fallthru
        _
      %p1085 = scmp.le.s32.totalorder 2, %s12
      // Predicated region
      $region49: #{feature_cnn_forward.1} parent=5 // pred_check
        %p1086 = pneg %p1085
      $region50: #{feature_cnn_forward.1} parent=5 // pred_check_branch
        %1088 = sbr.rel (%p1086) target = $region52
      $region51: #{feature_cnn_forward.1} parent=5 // pred_region
        %s1089 = ssub.s32 %s12, 2
        // Predicated region
        $region53: #{feature_cnn_forward.1} parent=51 // pred_check
          %p1090 = pneg %p151
        $region54: #{feature_cnn_forward.1} parent=51 // pred_check_branch
          %1092 = sbr.rel (%p1090) target = $region56
        $region55: #{feature_cnn_forward.1} parent=51 // pred_region
          %p1093 = scmp.lt.s32.totalorder %s18, 1
          %s1094 = scalar_select %p1093, %s18, 1
          %s1095 = smul.addr %s1094, 8
          %s1096 = scalar_lea.vmem %s5, %s1095
        $region56: #{feature_cnn_forward.1} parent=51 // pred_fallthru
          _
      $region52: #{feature_cnn_forward.1} parent=5 // pred_fallthru
        _
    $region6: #{feature_cnn_forward.1} parent=1 // loop_footer
      %s16 = sadd.s32 1, %s12
    $region7: #{feature_cnn_forward.1} parent=1 // loop_footer_branch
      %11 = sbr.rel target = $region3
    $region8: #{feature_cnn_forward.1} parent=1 // loop_exit
      _
    %1097 = vsyncpa [#allocation7], 1
    %s1098 = scalar_lea.sflag [#allocation7], 1
    %1099 = vsyncpa %s1098, 1

</llo_original>
